<compile_context>
chip_gen: v7x
topology: tpu7x:2x2x1
jax: 0.10.0
libtpu: 0.0.40
codegen_flags: <defaults>
</compile_context>

<pallas_src>
import functools
import math

import jax
import jax.numpy as jnp
from jax.experimental import pallas as pl
from jax.experimental.pallas import tpu as pltpu


def _round_up(x, m):
    return ((x + m - 1) // m) * m


def _mlp_kernel(x_ref, w1_ref, b1_ref, w2_ref, b2_ref, o_ref):
    """Fused Linear -> ReLU -> Linear on one (TM, IN) row block.

    x_ref:  (TM, IN)   bf16
    w1_ref: (IN, MID)  bf16      b1_ref: (1, MID) f32
    w2_ref: (MID, OUT) bf16      b2_ref: (1, OUT) f32
    o_ref:  (TM, OUT)  f32
    The (TM, MID) intermediate stays in VMEM / vregs.
    """
    h = jnp.dot(x_ref[...], w1_ref[...], preferred_element_type=jnp.float32)
    h = jnp.maximum(h + b1_ref[...], 0.0)                       # FC: Linear + ReLU (f32)
    o = jnp.dot(h.astype(w2_ref.dtype), w2_ref[...],
                preferred_element_type=jnp.float32)             # second Linear
    o_ref[...] = (o + b2_ref[...]).astype(o_ref.dtype)


def mlp_forward(x, w1, b1, w2, b2, *, block_m=256):
    """MLP forward.

    x : (..., IN) float32 (any number of leading dims, applied over last dim)
    w1: (IN, MID) bf16, b1: (1, MID) f32
    w2: (MID, OUT) bf16, b2: (1, OUT) f32
    returns (..., OUT) float32
    """
    *lead, in_size = x.shape
    mid = w1.shape[1]
    out_size = w2.shape[1]
    m = math.prod(lead) if lead else 1

    x2d = x.reshape(m, in_size).astype(jnp.bfloat16)

    # Row tile: multiple of 8 sublanes, capped (keeps VMEM bounded on v7x's 64 MiB
    # and lets the 'parallel' grid axis shard across its 2 TensorCores).
    tm = min(block_m, _round_up(m, 8))
    m_pad = _round_up(m, tm)
    if m_pad != m:
        x2d = jnp.pad(x2d, ((0, m_pad - m), (0, 0)))
    grid = (m_pad // tm,)

    flops = 2 * m_pad * (in_size * mid + mid * out_size)
    bytes_accessed = (x2d.size * 2                       # bf16 activations in
                      + w1.size * 2 + w2.size * 2        # bf16 weights
                      + b1.size * 4 + b2.size * 4        # f32 biases
                      + m_pad * out_size * 4)            # f32 output

    out = pl.pallas_call(
        _mlp_kernel,
        out_shape=jax.ShapeDtypeStruct((m_pad, out_size), jnp.float32),
        grid=grid,
        in_specs=[
            pl.BlockSpec((tm, in_size), lambda i: (i, 0)),       # x rows stream
            pl.BlockSpec((in_size, mid), lambda i: (0, 0)),      # W1 resident
            pl.BlockSpec((1, mid), lambda i: (0, 0)),            # b1 resident
            pl.BlockSpec((mid, out_size), lambda i: (0, 0)),     # W2 resident
            pl.BlockSpec((1, out_size), lambda i: (0, 0)),       # b2 resident
        ],
        out_specs=pl.BlockSpec((tm, out_size), lambda i: (i, 0)),
        compiler_params=pltpu.CompilerParams(
            dimension_semantics=("parallel",)),
        cost_estimate=pl.CostEstimate(flops=flops, transcendentals=0,
                                      bytes_accessed=bytes_accessed),
    )(x2d, w1, b1, w2, b2)

    out = out[:m]
    return out.reshape(*lead, out_size)


# ----------------------------- Parameters -----------------------------

def init_params(key, in_size, mid_size, out_size):
    k1, k2, k3, k4 = jax.random.split(key, 4)
    # nn.Linear stores weight (out, in); we store the transpose (in, out) so the
    # kernels compute x @ W + b == x @ weight.T + bias.
    w1 = 0.02 * jax.random.normal(k1, (in_size, mid_size), jnp.float32)
    b1 = 0.02 * jax.random.normal(k2, (1, mid_size), jnp.float32)
    w2 = 0.02 * jax.random.normal(k3, (mid_size, out_size), jnp.float32)
    b2 = 0.02 * jax.random.normal(k4, (1, out_size), jnp.float32)
    return w1, b1, w2, b2


# ----------------------------- Driver -----------------------------

if __name__ == "__main__":
    key = jax.random.PRNGKey(0)
    kx, kp = jax.random.split(key, 2)

    # Shapes consistent with the module's use as an FFN inner MLP: 512 -> 64 -> 512,
    # applied over a (batch, seq, hidden) activation tensor.
    B, L = 2, 8
    IN, MID, OUT = 512, 64, 512

    x = jax.random.normal(kx, (B, L, IN), jnp.float32)
    w1_f32, b1, w2_f32, b2 = init_params(kp, IN, MID, OUT)

    # bf16 matmul operands (f32 accumulation inside the kernel).
    w1 = w1_f32.astype(jnp.bfloat16)
    w2 = w2_f32.astype(jnp.bfloat16)

    fwd = jax.jit(mlp_forward)
    out = fwd(x, w1, b1, w2, b2)
    jax.block_until_ready(out)

    # f32 reference of the PyTorch forward: linear(relu(linear(x))), dropout=identity.
    ref = jnp.maximum(x.reshape(-1, IN) @ w1_f32 + b1, 0.0) @ w2_f32 + b2
    ref = ref.reshape(B, L, OUT)

    assert out.shape == (B, L, OUT), out.shape
    assert bool(jnp.all(jnp.isfinite(out)))
    rel_err = float(jnp.max(jnp.abs(out - ref)) / (jnp.max(jnp.abs(ref)) + 1e-6))
    assert rel_err < 2e-2, rel_err
    print("KERNEL_OK")
</pallas_src>

<mosaic_0001>
module attributes {stable_mosaic.version = 11 : i64} {
  func.func @_mlp_kernel(%arg0: i32, %arg1: memref<16x512xbf16, #tpu.memory_space<vmem>>, %arg2: memref<512x64xbf16, #tpu.memory_space<vmem>>, %arg3: memref<1x64xf32, #tpu.memory_space<vmem>>, %arg4: memref<64x512xbf16, #tpu.memory_space<vmem>>, %arg5: memref<1x512xf32, #tpu.memory_space<vmem>>, %arg6: memref<16x512xf32, #tpu.memory_space<vmem>>) attributes {dimension_semantics = [#tpu.dimension_semantics<parallel>], iteration_bounds = array<i64: 1>, scalar_prefetch = 0 : i64, scratch_operands = 0 : i64, tpu.core_type = #tpu.core_type<tc>, window_params = [{transform_indices = @transform_0, window_bounds = array<i64: 16, 512>}, {pipeline_mode = #tpu.pipeline_mode<synchronous>, transform_indices = @transform_1, window_bounds = array<i64: 512, 64>}, {pipeline_mode = #tpu.pipeline_mode<synchronous>, transform_indices = @transform_2, window_bounds = array<i64: 1, 64>}, {pipeline_mode = #tpu.pipeline_mode<synchronous>, transform_indices = @transform_3, window_bounds = array<i64: 64, 512>}, {pipeline_mode = #tpu.pipeline_mode<synchronous>, transform_indices = @transform_4, window_bounds = array<i64: 1, 512>}, {transform_indices = @transform_5, window_bounds = array<i64: 16, 512>}]} {
    %c0 = arith.constant 0 : index
    %c0_0 = arith.constant 0 : index
    %0 = vector.load %arg1[%c0, %c0_0] : memref<16x512xbf16, #tpu.memory_space<vmem>>, vector<16x512xbf16>
    %c0_1 = arith.constant 0 : index
    %c0_2 = arith.constant 0 : index
    %1 = vector.load %arg2[%c0_1, %c0_2] : memref<512x64xbf16, #tpu.memory_space<vmem>>, vector<512x64xbf16>
    %cst = arith.constant dense<0.000000e+00> : vector<16x64xf32>
    %2 = tpu.matmul %0, %1, %cst {dimension_numbers = #tpu.dot_dimension_numbers<[1], [0], [0], [1], [0, 0, 1, 1], [], []>} : vector<16x512xbf16>, vector<512x64xbf16>, vector<16x64xf32> -> vector<16x64xf32>
    %c0_3 = arith.constant 0 : index
    %c0_4 = arith.constant 0 : index
    %3 = vector.load %arg3[%c0_3, %c0_4] : memref<1x64xf32, #tpu.memory_space<vmem>>, vector<1x64xf32>
    %4 = vector.broadcast %3 : vector<1x64xf32> to vector<16x64xf32>
    %5 = arith.addf %2, %4 : vector<16x64xf32>
    %cst_5 = arith.constant 0.000000e+00 : f32
    %6 = vector.broadcast %cst_5 : f32 to vector<16x64xf32>
    %7 = arith.maximumf %5, %6 : vector<16x64xf32>
    %8 = arith.truncf %7 : vector<16x64xf32> to vector<16x64xbf16>
    %c0_6 = arith.constant 0 : index
    %c0_7 = arith.constant 0 : index
    %9 = vector.load %arg4[%c0_6, %c0_7] : memref<64x512xbf16, #tpu.memory_space<vmem>>, vector<64x512xbf16>
    %cst_8 = arith.constant dense<0.000000e+00> : vector<16x512xf32>
    %10 = tpu.matmul %8, %9, %cst_8 {dimension_numbers = #tpu.dot_dimension_numbers<[1], [0], [0], [1], [0, 0, 1, 1], [], []>} : vector<16x64xbf16>, vector<64x512xbf16>, vector<16x512xf32> -> vector<16x512xf32>
    %c0_9 = arith.constant 0 : index
    %c0_10 = arith.constant 0 : index
    %11 = vector.load %arg5[%c0_9, %c0_10] : memref<1x512xf32, #tpu.memory_space<vmem>>, vector<1x512xf32>
    %12 = vector.broadcast %11 : vector<1x512xf32> to vector<16x512xf32>
    %13 = arith.addf %10, %12 : vector<16x512xf32>
    %c0_11 = arith.constant 0 : index
    %c0_12 = arith.constant 0 : index
    %14 = vector.load %arg6[%c0_11, %c0_12] : memref<16x512xf32, #tpu.memory_space<vmem>>, vector<16x512xf32>
    tpu.vector_store %arg6[%c0_11, %c0_12], %13 {strides = array<i32>} : memref<16x512xf32, #tpu.memory_space<vmem>>, vector<16x512xf32>,
    return
  }
  func.func @transform_0(%arg0: i32) -> (i32, i32) {
    %c0_i32 = arith.constant 0 : i32
    %c0_i32_0 = arith.constant 0 : i32
    return %arg0, %c0_i32 : i32, i32
  }
  func.func @transform_1(%arg0: i32) -> (i32, i32) {
    %c0_i32 = arith.constant 0 : i32
    %c0_i32_0 = arith.constant 0 : i32
    %c0_i32_1 = arith.constant 0 : i32
    return %c0_i32, %c0_i32_0 : i32, i32
  }
  func.func @transform_2(%arg0: i32) -> (i32, i32) {
    %c0_i32 = arith.constant 0 : i32
    %c0_i32_0 = arith.constant 0 : i32
    %c0_i32_1 = arith.constant 0 : i32
    return %c0_i32, %c0_i32_0 : i32, i32
  }
  func.func @transform_3(%arg0: i32) -> (i32, i32) {
    %c0_i32 = arith.constant 0 : i32
    %c0_i32_0 = arith.constant 0 : i32
    %c0_i32_1 = arith.constant 0 : i32
    return %c0_i32, %c0_i32_0 : i32, i32
  }
  func.func @transform_4(%arg0: i32) -> (i32, i32) {
    %c0_i32 = arith.constant 0 : i32
    %c0_i32_0 = arith.constant 0 : i32
    %c0_i32_1 = arith.constant 0 : i32
    return %c0_i32, %c0_i32_0 : i32, i32
  }
  func.func @transform_5(%arg0: i32) -> (i32, i32) {
    %c0_i32 = arith.constant 0 : i32
    %c0_i32_0 = arith.constant 0 : i32
    return %arg0, %c0_i32 : i32, i32
  }
}

</mosaic_0001>

<llo_original>
// kernel: mlp_forward.1
$region0: #{mlp_forward.1}
  #allocation0 [shape = 'u32[]', space=smem, size = 0x4, offset = 0x4, fixed_abs, tag = 'smem constant byte address 0x4 - core index']
  #allocation1 [shape = 'u32[144,128]{1,0:T(1,128)}', space=vmem, size = 0x12000, scoped, tag = 'internal scratch']
  %s0 = inlined_call_operand.vmem [shape: bf16[16,512], index: 0, kind: input, shape index: {}]
  %s1 = inlined_call_operand.vmem [shape: bf16[512,64], index: 1, kind: input, shape index: {}]
  %s2 = inlined_call_operand.vmem [shape: f32[1,64], index: 2, kind: input, shape index: {}]
  %s3 = inlined_call_operand.vmem [shape: bf16[64,512], index: 3, kind: input, shape index: {}]
  %s4 = inlined_call_operand.vmem [shape: f32[1,512], index: 4, kind: input, shape index: {}]
  %s5 = inlined_call_operand.hbm [shape: f32[16,512], index: 5, kind: output, shape index: {}]
  %s6 = sld [smem:[#allocation0]]
  $region30: #{mlp_forward.1} parent=0
    _
  %s8 = ssub.s32 1, %s6
  %s9 = scalar_select 0, %s8, %s6
  $region1: #{mlp_forward.1} parent=0
    #allocation2 [shape = 'u8[32768]{0}', space=vmem, size = 0x8000, scoped, tag = 'output window, operand 0, single buffered']
    #allocation3 [shape = 's32[1]{0}', space=sflag, size = 0x4, scoped, tag = 'scoped memory for mlp_forward.1']
    %10 = vsyncpa [#allocation3], 0
    // Predicated region
    $region2: #{mlp_forward.1} parent=1 // pred_check
      _
    $region3: #{mlp_forward.1} parent=1 // pred_check_branch
      %12 = sbr.rel (0) target = $region5
    $region4: #{mlp_forward.1} parent=1 // pred_region
      _
    $region5: #{mlp_forward.1} parent=1 // pred_fallthru
      _
    // Predicated region
    $region6: #{mlp_forward.1} parent=1 // pred_check
      _
    $region7: #{mlp_forward.1} parent=1 // pred_check_branch
      %14 = sbr.rel (0) target = $region9
    $region8: #{mlp_forward.1} parent=1 // pred_region
      _
    $region9: #{mlp_forward.1} parent=1 // pred_fallthru
      _
    // Predicated region
    $region10: #{mlp_forward.1} parent=1 // pred_check
      _
    $region11: #{mlp_forward.1} parent=1 // pred_check_branch
      %16 = sbr.rel (0) target = $region13
    $region12: #{mlp_forward.1} parent=1 // pred_region
      _
    $region13: #{mlp_forward.1} parent=1 // pred_fallthru
      _
    // Predicated region
    $region14: #{mlp_forward.1} parent=1 // pred_check
      _
    $region15: #{mlp_forward.1} parent=1 // pred_check_branch
      %18 = sbr.rel (0) target = $region17
    $region16: #{mlp_forward.1} parent=1 // pred_region
      _
    $region17: #{mlp_forward.1} parent=1 // pred_fallthru
      _
    // Predicated region
    $region18: #{mlp_forward.1} parent=1 // pred_check
      _
    $region19: #{mlp_forward.1} parent=1 // pred_check_branch
      %20 = sbr.rel (0) target = $region21
    $region20: #{mlp_forward.1} parent=1 // pred_region
      _
    $region21: #{mlp_forward.1} parent=1 // pred_fallthru
      _
    %v22 = vld [vmem:[%s0] sm:$0xff]
    %v23 = vld [vmem:[%s0 + $0x8] sm:$0xff]
    %v24 = vld [vmem:[%s0 + $0x10] sm:$0xff]
    %v25 = vld [vmem:[%s0 + $0x18] sm:$0xff]
    %v26 = vld [vmem:[%s1] sm:$0xf]
    %v27 = vld [vmem:[%s1 + $0x4] sm:$0xf]
    %v28 = vld [vmem:[%s1 + $0x8] sm:$0xf]
    %v29 = vld [vmem:[%s1 + $0xc] sm:$0xf]
    %v30 = vld [vmem:[%s1 + $0x10] sm:$0xf]
    %v31 = vld [vmem:[%s1 + $0x14] sm:$0xf]
    %v32 = vld [vmem:[%s1 + $0x18] sm:$0xf]
    %v33 = vld [vmem:[%s1 + $0x1c] sm:$0xf]
    %v34 = vld [vmem:[%s1 + $0x20] sm:$0xf]
    %v35 = vld [vmem:[%s1 + $0x24] sm:$0xf]
    %v36 = vld [vmem:[%s1 + $0x28] sm:$0xf]
    %v37 = vld [vmem:[%s1 + $0x2c] sm:$0xf]
    %v38 = vld [vmem:[%s1 + $0x30] sm:$0xf]
    %v39 = vld [vmem:[%s1 + $0x34] sm:$0xf]
    %v40 = vld [vmem:[%s1 + $0x38] sm:$0xf]
    %v41 = vld [vmem:[%s1 + $0x3c] sm:$0xf]
    %v42 = vld [vmem:[%s1 + $0x40] sm:$0xf]
    %v43 = vld [vmem:[%s1 + $0x44] sm:$0xf]
    %v44 = vld [vmem:[%s1 + $0x48] sm:$0xf]
    %v45 = vld [vmem:[%s1 + $0x4c] sm:$0xf]
    %v46 = vld [vmem:[%s1 + $0x50] sm:$0xf]
    %v47 = vld [vmem:[%s1 + $0x54] sm:$0xf]
    %v48 = vld [vmem:[%s1 + $0x58] sm:$0xf]
    %v49 = vld [vmem:[%s1 + $0x5c] sm:$0xf]
    %v50 = vld [vmem:[%s1 + $0x60] sm:$0xf]
    %v51 = vld [vmem:[%s1 + $0x64] sm:$0xf]
    %v52 = vld [vmem:[%s1 + $0x68] sm:$0xf]
    %v53 = vld [vmem:[%s1 + $0x6c] sm:$0xf]
    %v54 = vld [vmem:[%s1 + $0x70] sm:$0xf]
    %v55 = vld [vmem:[%s1 + $0x74] sm:$0xf]
    %v56 = vld [vmem:[%s1 + $0x78] sm:$0xf]
    %v57 = vld [vmem:[%s1 + $0x7c] sm:$0xf]
    %v58 = vld [vmem:[%s1 + $0x80] sm:$0xf]
    %v59 = vld [vmem:[%s1 + $0x84] sm:$0xf]
    %v60 = vld [vmem:[%s1 + $0x88] sm:$0xf]
    %v61 = vld [vmem:[%s1 + $0x8c] sm:$0xf]
    %v62 = vld [vmem:[%s1 + $0x90] sm:$0xf]
    %v63 = vld [vmem:[%s1 + $0x94] sm:$0xf]
    %v64 = vld [vmem:[%s1 + $0x98] sm:$0xf]
    %v65 = vld [vmem:[%s1 + $0x9c] sm:$0xf]
    %v66 = vld [vmem:[%s1 + $0xa0] sm:$0xf]
    %v67 = vld [vmem:[%s1 + $0xa4] sm:$0xf]
    %v68 = vld [vmem:[%s1 + $0xa8] sm:$0xf]
    %v69 = vld [vmem:[%s1 + $0xac] sm:$0xf]
    %v70 = vld [vmem:[%s1 + $0xb0] sm:$0xf]
    %v71 = vld [vmem:[%s1 + $0xb4] sm:$0xf]
    %v72 = vld [vmem:[%s1 + $0xb8] sm:$0xf]
    %v73 = vld [vmem:[%s1 + $0xbc] sm:$0xf]
    %v74 = vld [vmem:[%s1 + $0xc0] sm:$0xf]
    %v75 = vld [vmem:[%s1 + $0xc4] sm:$0xf]
    %v76 = vld [vmem:[%s1 + $0xc8] sm:$0xf]
    %v77 = vld [vmem:[%s1 + $0xcc] sm:$0xf]
    %v78 = vld [vmem:[%s1 + $0xd0] sm:$0xf]
    %v79 = vld [vmem:[%s1 + $0xd4] sm:$0xf]
    %v80 = vld [vmem:[%s1 + $0xd8] sm:$0xf]
    %v81 = vld [vmem:[%s1 + $0xdc] sm:$0xf]
    %v82 = vld [vmem:[%s1 + $0xe0] sm:$0xf]
    %v83 = vld [vmem:[%s1 + $0xe4] sm:$0xf]
    %v84 = vld [vmem:[%s1 + $0xe8] sm:$0xf]
    %v85 = vld [vmem:[%s1 + $0xec] sm:$0xf]
    %v86 = vld [vmem:[%s1 + $0xf0] sm:$0xf]
    %v87 = vld [vmem:[%s1 + $0xf4] sm:$0xf]
    %v88 = vld [vmem:[%s1 + $0xf8] sm:$0xf]
    %v89 = vld [vmem:[%s1 + $0xfc] sm:$0xf]
    %v90 = vld [vmem:[%s2] sm:$0x1]
    %v92 = vlaneseq
    %v93 = vshrl.u32 %v92, 7
    %v94 = vsub.s32 0, %v93
    %v95 = vrot.slane %v90, %v94
    %v101 = vunpack.c.l.b16 %v22
    %v102 = vunpack.c.h.b16 %v22
    %v103 = vunpack.c.l.b16 %v23
    %v104 = vunpack.c.h.b16 %v23
    %v105 = vunpack.c.l.b16 %v24
    %v106 = vunpack.c.h.b16 %v24
    %v107 = vunpack.c.l.b16 %v25
    %v108 = vunpack.c.h.b16 %v25
    %v109 = vpack.c.b16 %v105, %v101
    %v110 = vpack.c.b16 %v106, %v102
    %v111 = vpack.c.b16 %v107, %v103
    %v112 = vpack.c.b16 %v108, %v104
    %v181 = vunpack.c.l.b16 %v26
    %v182 = vunpack.c.l.b16 %v27
    %v183 = vunpack.c.l.b16 %v28
    %v184 = vunpack.c.l.b16 %v29
    %v185 = vunpack.c.l.b16 %v30
    %v186 = vunpack.c.l.b16 %v31
    %v187 = vunpack.c.l.b16 %v32
    %v188 = vunpack.c.l.b16 %v33
    %v189 = vunpack.c.l.b16 %v34
    %v190 = vunpack.c.l.b16 %v35
    %v191 = vunpack.c.l.b16 %v36
    %v192 = vunpack.c.l.b16 %v37
    %v193 = vunpack.c.l.b16 %v38
    %v194 = vunpack.c.l.b16 %v39
    %v195 = vunpack.c.l.b16 %v40
    %v196 = vunpack.c.l.b16 %v41
    %v197 = vunpack.c.l.b16 %v42
    %v198 = vunpack.c.l.b16 %v43
    %v199 = vunpack.c.l.b16 %v44
    %v200 = vunpack.c.l.b16 %v45
    %v201 = vunpack.c.l.b16 %v46
    %v202 = vunpack.c.l.b16 %v47
    %v203 = vunpack.c.l.b16 %v48
    %v204 = vunpack.c.l.b16 %v49
    %v205 = vunpack.c.l.b16 %v50
    %v206 = vunpack.c.l.b16 %v51
    %v207 = vunpack.c.l.b16 %v52
    %v208 = vunpack.c.l.b16 %v53
    %v209 = vunpack.c.l.b16 %v54
    %v210 = vunpack.c.l.b16 %v55
    %v211 = vunpack.c.l.b16 %v56
    %v212 = vunpack.c.l.b16 %v57
    %v213 = vunpack.c.l.b16 %v58
    %v214 = vunpack.c.l.b16 %v59
    %v215 = vunpack.c.l.b16 %v60
    %v216 = vunpack.c.l.b16 %v61
    %v217 = vunpack.c.l.b16 %v62
    %v218 = vunpack.c.l.b16 %v63
    %v219 = vunpack.c.l.b16 %v64
    %v220 = vunpack.c.l.b16 %v65
    %v221 = vunpack.c.l.b16 %v66
    %v222 = vunpack.c.l.b16 %v67
    %v223 = vunpack.c.l.b16 %v68
    %v224 = vunpack.c.l.b16 %v69
    %v225 = vunpack.c.l.b16 %v70
    %v226 = vunpack.c.l.b16 %v71
    %v227 = vunpack.c.l.b16 %v72
    %v228 = vunpack.c.l.b16 %v73
    %v229 = vunpack.c.l.b16 %v74
    %v230 = vunpack.c.l.b16 %v75
    %v231 = vunpack.c.l.b16 %v76
    %v232 = vunpack.c.l.b16 %v77
    %v233 = vunpack.c.l.b16 %v78
    %v234 = vunpack.c.l.b16 %v79
    %v235 = vunpack.c.l.b16 %v80
    %v236 = vunpack.c.l.b16 %v81
    %v237 = vunpack.c.l.b16 %v82
    %v238 = vunpack.c.l.b16 %v83
    %v239 = vunpack.c.l.b16 %v84
    %v240 = vunpack.c.l.b16 %v85
    %v241 = vunpack.c.l.b16 %v86
    %v242 = vunpack.c.l.b16 %v87
    %v243 = vunpack.c.l.b16 %v88
    %v244 = vunpack.c.l.b16 %v89
    %v245 = vpack.c.b16 %v182, %v181
    %v246 = vpack.c.b16 %v184, %v183
    %v247 = vpack.c.b16 %v186, %v185
    %v248 = vpack.c.b16 %v188, %v187
    %v249 = vpack.c.b16 %v190, %v189
    %v250 = vpack.c.b16 %v192, %v191
    %v251 = vpack.c.b16 %v194, %v193
    %v252 = vpack.c.b16 %v196, %v195
    %v253 = vpack.c.b16 %v198, %v197
    %v254 = vpack.c.b16 %v200, %v199
    %v255 = vpack.c.b16 %v202, %v201
    %v256 = vpack.c.b16 %v204, %v203
    %v257 = vpack.c.b16 %v206, %v205
    %v258 = vpack.c.b16 %v208, %v207
    %v259 = vpack.c.b16 %v210, %v209
    %v260 = vpack.c.b16 %v212, %v211
    %v261 = vpack.c.b16 %v214, %v213
    %v262 = vpack.c.b16 %v216, %v215
    %v263 = vpack.c.b16 %v218, %v217
    %v264 = vpack.c.b16 %v220, %v219
    %v265 = vpack.c.b16 %v222, %v221
    %v266 = vpack.c.b16 %v224, %v223
    %v267 = vpack.c.b16 %v226, %v225
    %v268 = vpack.c.b16 %v228, %v227
    %v269 = vpack.c.b16 %v230, %v229
    %v270 = vpack.c.b16 %v232, %v231
    %v271 = vpack.c.b16 %v234, %v233
    %v272 = vpack.c.b16 %v236, %v235
    %v273 = vpack.c.b16 %v238, %v237
    %v274 = vpack.c.b16 %v240, %v239
    %v275 = vpack.c.b16 %v242, %v241
    %v276 = vpack.c.b16 %v244, %v243
    %309 = vmatprep.subr.bf16.mxu0 0
    %310 = vmatpush1.bf16.msra.mxu0 %v245
    %311 = vmatprep.subr.bf16.mxu0 0
    %312 = vmatpush1.bf16.msra.mxu0 %v246
    %313 = vmatprep.subr.bf16.mxu0 0
    %314 = vmatpush1.bf16.msra.mxu0 %v247
    %315 = vmatprep.subr.bf16.mxu0 0
    %316 = vmatpush1.bf16.msra.mxu0 %v248
    %317 = vmatprep.subr.bf16.mxu0 0
    %318 = vmatpush1.bf16.msra.mxu0 %v249
    %319 = vmatprep.subr.bf16.mxu0 0
    %320 = vmatpush1.bf16.msra.mxu0 %v250
    %321 = vmatprep.subr.bf16.mxu0 0
    %322 = vmatpush1.bf16.msra.mxu0 %v251
    %323 = vmatprep.subr.bf16.mxu0 0
    %324 = vmatpush1.bf16.msra.mxu0 %v252
    %325 = vmatprep.subr.bf16.mxu0 0
    %326 = vmatpush1.bf16.msra.mxu0 %v253
    %327 = vmatprep.subr.bf16.mxu0 0
    %328 = vmatpush1.bf16.msra.mxu0 %v254
    %329 = vmatprep.subr.bf16.mxu0 0
    %330 = vmatpush1.bf16.msra.mxu0 %v255
    %331 = vmatprep.subr.bf16.mxu0 0
    %332 = vmatpush1.bf16.msra.mxu0 %v256
    %333 = vmatprep.subr.bf16.mxu0 0
    %334 = vmatpush1.bf16.msra.mxu0 %v257
    %335 = vmatprep.subr.bf16.mxu0 0
    %336 = vmatpush1.bf16.msra.mxu0 %v258
    %337 = vmatprep.subr.bf16.mxu0 0
    %338 = vmatpush1.bf16.msra.mxu0 %v259
    %339 = vmatprep.subr.bf16.mxu0 0
    %340 = vmatpush1.bf16.msra.mxu0 %v260
    %341 = vmatprep.mubr.bf16.mxu0 %v110
    %342 = vmatmul.mubr.bf16.gmra.mrb[0].mxu0 %v109
    %v343 = vpop.f32.mrb[0].mxu0
    %v344 = vadd.f32 %v95, %v343
    %v345 = vpop.f32.mrb[0].mxu0
    %v346 = vpop.f32.mrb[0].mxu0
    %v347 = vadd.f32 %v95, %v346
    %v348 = vpop.f32.mrb[0].mxu0
    %349 = vdwg.mxu0
    %350 = vmatprep.subr.bf16.mxu0 0
    %351 = vmatpush1.bf16.msra.mxu0 %v261
    %352 = vmatprep.subr.bf16.mxu0 0
    %353 = vmatpush1.bf16.msra.mxu0 %v262
    %354 = vmatprep.subr.bf16.mxu0 0
    %355 = vmatpush1.bf16.msra.mxu0 %v263
    %356 = vmatprep.subr.bf16.mxu0 0
    %357 = vmatpush1.bf16.msra.mxu0 %v264
    %358 = vmatprep.subr.bf16.mxu0 0
    %359 = vmatpush1.bf16.msra.mxu0 %v265
    %360 = vmatprep.subr.bf16.mxu0 0
    %361 = vmatpush1.bf16.msra.mxu0 %v266
    %362 = vmatprep.subr.bf16.mxu0 0
    %363 = vmatpush1.bf16.msra.mxu0 %v267
    %364 = vmatprep.subr.bf16.mxu0 0
    %365 = vmatpush1.bf16.msra.mxu0 %v268
    %366 = vmatprep.subr.bf16.mxu0 0
    %367 = vmatpush1.bf16.msra.mxu0 %v269
    %368 = vmatprep.subr.bf16.mxu0 0
    %369 = vmatpush1.bf16.msra.mxu0 %v270
    %370 = vmatprep.subr.bf16.mxu0 0
    %371 = vmatpush1.bf16.msra.mxu0 %v271
    %372 = vmatprep.subr.bf16.mxu0 0
    %373 = vmatpush1.bf16.msra.mxu0 %v272
    %374 = vmatprep.subr.bf16.mxu0 0
    %375 = vmatpush1.bf16.msra.mxu0 %v273
    %376 = vmatprep.subr.bf16.mxu0 0
    %377 = vmatpush1.bf16.msra.mxu0 %v274
    %378 = vmatprep.subr.bf16.mxu0 0
    %379 = vmatpush1.bf16.msra.mxu0 %v275
    %380 = vmatprep.subr.bf16.mxu0 0
    %381 = vmatpush1.bf16.msra.mxu0 %v276
    %382 = vmatprep.mubr.bf16.mxu0 %v112
    %383 = vmatmul.mubr.bf16.gmra.mrb[0].mxu0 %v111
    %v384 = vpop.f32.mrb[0].mxu0
    %v385 = vadd.f32 %v344, %v384
    %v386 = vpop.f32.mrb[0].mxu0
    %v387 = vpop.f32.mrb[0].mxu0
    %v388 = vadd.f32 %v347, %v387
    %v389 = vpop.f32.mrb[0].mxu0
    %390 = vdwg.mxu0
    %v391 = vmax.f32 %v385, 0.0
    %v392 = vmax.f32 %v388, 0.0
    %v393 = vpack.c.bf16 %v392, %v391
    %v394 = vld [vmem:[%s3] sm:$0xff]
    %v395 = vld [vmem:[%s3 + $0x8] sm:$0xff]
    %v396 = vld [vmem:[%s3 + $0x10] sm:$0xff]
    %v397 = vld [vmem:[%s3 + $0x18] sm:$0xff]
    %v398 = vld [vmem:[%s3 + $0x20] sm:$0xff]
    %v399 = vld [vmem:[%s3 + $0x28] sm:$0xff]
    %v400 = vld [vmem:[%s3 + $0x30] sm:$0xff]
    %v401 = vld [vmem:[%s3 + $0x38] sm:$0xff]
    %v402 = vld [vmem:[%s3 + $0x40] sm:$0xff]
    %v403 = vld [vmem:[%s3 + $0x48] sm:$0xff]
    %v404 = vld [vmem:[%s3 + $0x50] sm:$0xff]
    %v405 = vld [vmem:[%s3 + $0x58] sm:$0xff]
    %v406 = vld [vmem:[%s3 + $0x60] sm:$0xff]
    %v407 = vld [vmem:[%s3 + $0x68] sm:$0xff]
    %v408 = vld [vmem:[%s3 + $0x70] sm:$0xff]
    %v409 = vld [vmem:[%s3 + $0x78] sm:$0xff]
    %v410 = vld [vmem:[%s4] sm:$0xf]
    %v412 = vlaneseq
    %v413 = vshrl.u32 %v412, 7
    %v414 = vsub.s32 0, %v413
    %v415 = vrot.slane %v410, %v414
    %v416 = vlaneseq
    %v417 = vshrl.u32 %v416, 7
    %v418 = vsub.s32 1, %v417
    %v419 = vrot.slane %v410, %v418
    %v420 = vlaneseq
    %v421 = vshrl.u32 %v420, 7
    %v422 = vsub.s32 2, %v421
    %v423 = vrot.slane %v410, %v422
    %v424 = vlaneseq
    %v425 = vshrl.u32 %v424, 7
    %v426 = vsub.s32 3, %v425
    %v427 = vrot.slane %v410, %v426
    %v448 = vunpack.c.l.b16 %v394
    %v449 = vunpack.c.h.b16 %v394
    %v450 = vunpack.c.l.b16 %v395
    %v451 = vunpack.c.h.b16 %v395
    %v452 = vunpack.c.l.b16 %v396
    %v453 = vunpack.c.h.b16 %v396
    %v454 = vunpack.c.l.b16 %v397
    %v455 = vunpack.c.h.b16 %v397
    %v456 = vunpack.c.l.b16 %v398
    %v457 = vunpack.c.h.b16 %v398
    %v458 = vunpack.c.l.b16 %v399
    %v459 = vunpack.c.h.b16 %v399
    %v460 = vunpack.c.l.b16 %v400
    %v461 = vunpack.c.h.b16 %v400
    %v462 = vunpack.c.l.b16 %v401
    %v463 = vunpack.c.h.b16 %v401
    %v464 = vunpack.c.l.b16 %v402
    %v465 = vunpack.c.h.b16 %v402
    %v466 = vunpack.c.l.b16 %v403
    %v467 = vunpack.c.h.b16 %v403
    %v468 = vunpack.c.l.b16 %v404
    %v469 = vunpack.c.h.b16 %v404
    %v470 = vunpack.c.l.b16 %v405
    %v471 = vunpack.c.h.b16 %v405
    %v472 = vunpack.c.l.b16 %v406
    %v473 = vunpack.c.h.b16 %v406
    %v474 = vunpack.c.l.b16 %v407
    %v475 = vunpack.c.h.b16 %v407
    %v476 = vunpack.c.l.b16 %v408
    %v477 = vunpack.c.h.b16 %v408
    %v478 = vunpack.c.l.b16 %v409
    %v479 = vunpack.c.h.b16 %v409
    %v480 = vpack.c.b16 %v452, %v448
    %v481 = vpack.c.b16 %v453, %v449
    %v482 = vpack.c.b16 %v454, %v450
    %v483 = vpack.c.b16 %v455, %v451
    %v484 = vpack.c.b16 %v460, %v456
    %v485 = vpack.c.b16 %v461, %v457
    %v486 = vpack.c.b16 %v462, %v458
    %v487 = vpack.c.b16 %v463, %v459
    %v488 = vpack.c.b16 %v468, %v464
    %v489 = vpack.c.b16 %v469, %v465
    %v490 = vpack.c.b16 %v470, %v466
    %v491 = vpack.c.b16 %v471, %v467
    %v492 = vpack.c.b16 %v476, %v472
    %v493 = vpack.c.b16 %v477, %v473
    %v494 = vpack.c.b16 %v478, %v474
    %v495 = vpack.c.b16 %v479, %v475
    %vm512 = vcmask 523264
    %v514 = vsel %vm512, %v393, 0
    %516 = vmatprep.subr.bf16.mxu0 %v481
    %517 = vmatpush1.bf16.msra.mxu0 %v480
    %518 = vmatprep.subr.bf16.mxu0 %v485
    %519 = vmatpush1.bf16.msra.mxu0 %v484
    %520 = vmatprep.subr.bf16.mxu0 %v489
    %521 = vmatpush1.bf16.msra.mxu0 %v488
    %522 = vmatprep.subr.bf16.mxu0 %v493
    %523 = vmatpush1.bf16.msra.mxu0 %v492
    %524 = vmatprep.subr.bf16.mxu0 0
    %525 = vmatpush1.bf16.msra.mxu0 0
    %526 = vmatprep.subr.bf16.mxu0 0
    %527 = vmatpush1.bf16.msra.mxu0 0
    %528 = vmatprep.subr.bf16.mxu0 0
    %529 = vmatpush1.bf16.msra.mxu0 0
    %530 = vmatprep.subr.bf16.mxu0 0
    %531 = vmatpush1.bf16.msra.mxu0 0
    %532 = vmatprep.subr.bf16.mxu0 0
    %533 = vmatpush1.bf16.msra.mxu0 0
    %534 = vmatprep.subr.bf16.mxu0 0
    %535 = vmatpush1.bf16.msra.mxu0 0
    %536 = vmatprep.subr.bf16.mxu0 0
    %537 = vmatpush1.bf16.msra.mxu0 0
    %538 = vmatprep.subr.bf16.mxu0 0
    %539 = vmatpush1.bf16.msra.mxu0 0
    %540 = vmatprep.subr.bf16.mxu0 0
    %541 = vmatpush1.bf16.msra.mxu0 0
    %542 = vmatprep.subr.bf16.mxu0 0
    %543 = vmatpush1.bf16.msra.mxu0 0
    %544 = vmatprep.subr.bf16.mxu0 0
    %545 = vmatpush1.bf16.msra.mxu0 0
    %546 = vmatprep.subr.bf16.mxu0 0
    %547 = vmatpush1.bf16.msra.mxu0 0
    %548 = vmatprep.mubr.bf16.mxu0 0
    %549 = vmatmul.mubr.bf16.gmra.mrb[0].mxu0 %v514
    %v550 = vpop.f32.mrb[0].mxu0
    %v551 = vadd.f32 %v415, %v550
    %v552 = vpop.f32.mrb[0].mxu0
    %v553 = vadd.f32 %v419, %v552
    %v554 = vpop.f32.mrb[0].mxu0
    %v555 = vadd.f32 %v415, %v554
    %v556 = vpop.f32.mrb[0].mxu0
    %v557 = vadd.f32 %v419, %v556
    %558 = vdwg.mxu0
    %559 = vmatprep.subr.bf16.mxu0 %v483
    %560 = vmatpush1.bf16.msra.mxu0 %v482
    %561 = vmatprep.subr.bf16.mxu0 %v487
    %562 = vmatpush1.bf16.msra.mxu0 %v486
    %563 = vmatprep.subr.bf16.mxu0 %v491
    %564 = vmatpush1.bf16.msra.mxu0 %v490
    %565 = vmatprep.subr.bf16.mxu0 %v495
    %566 = vmatpush1.bf16.msra.mxu0 %v494
    %567 = vmatprep.subr.bf16.mxu0 0
    %568 = vmatpush1.bf16.msra.mxu0 0
    %569 = vmatprep.subr.bf16.mxu0 0
    %570 = vmatpush1.bf16.msra.mxu0 0
    %571 = vmatprep.subr.bf16.mxu0 0
    %572 = vmatpush1.bf16.msra.mxu0 0
    %573 = vmatprep.subr.bf16.mxu0 0
    %574 = vmatpush1.bf16.msra.mxu0 0
    %575 = vmatprep.subr.bf16.mxu0 0
    %576 = vmatpush1.bf16.msra.mxu0 0
    %577 = vmatprep.subr.bf16.mxu0 0
    %578 = vmatpush1.bf16.msra.mxu0 0
    %579 = vmatprep.subr.bf16.mxu0 0
    %580 = vmatpush1.bf16.msra.mxu0 0
    %581 = vmatprep.subr.bf16.mxu0 0
    %582 = vmatpush1.bf16.msra.mxu0 0
    %583 = vmatprep.subr.bf16.mxu0 0
    %584 = vmatpush1.bf16.msra.mxu0 0
    %585 = vmatprep.subr.bf16.mxu0 0
    %586 = vmatpush1.bf16.msra.mxu0 0
    %587 = vmatprep.subr.bf16.mxu0 0
    %588 = vmatpush1.bf16.msra.mxu0 0
    %589 = vmatprep.subr.bf16.mxu0 0
    %590 = vmatpush1.bf16.msra.mxu0 0
    %591 = vmatprep.mubr.bf16.mxu0 0
    %592 = vmatmul.mubr.bf16.gmra.mrb[0].mxu0 %v514
    %v593 = vpop.f32.mrb[0].mxu0
    %v594 = vadd.f32 %v423, %v593
    %v595 = vpop.f32.mrb[0].mxu0
    %v596 = vadd.f32 %v427, %v595
    %v597 = vpop.f32.mrb[0].mxu0
    %v598 = vadd.f32 %v423, %v597
    %v599 = vpop.f32.mrb[0].mxu0
    %v600 = vadd.f32 %v427, %v599
    %601 = vdwg.mxu0
    %602 = vst [vmem:[#allocation2] sm:$0xff] %v551
    %603 = vst [vmem:[#allocation2 + $0x8] sm:$0xff] %v553
    %604 = vst [vmem:[#allocation2 + $0x10] sm:$0xff] %v594
    %605 = vst [vmem:[#allocation2 + $0x18] sm:$0xff] %v596
    %606 = vst [vmem:[#allocation2 + $0x20] sm:$0xff] %v555
    %607 = vst [vmem:[#allocation2 + $0x28] sm:$0xff] %v557
    %608 = vst [vmem:[#allocation2 + $0x30] sm:$0xff] %v598
    %609 = vst [vmem:[#allocation2 + $0x38] sm:$0xff] %v600
    // Predicated region
    $region22: #{mlp_forward.1} parent=1 // pred_check
      _
    $region23: #{mlp_forward.1} parent=1 // pred_check_branch
      %611 = sbr.rel (0) target = $region25
    $region24: #{mlp_forward.1} parent=1 // pred_region
      %s613 = ssub.s32 1024, 1024
      %614 = vsyncadd [#allocation3], %s613
      %s615 = sshll.u32 [#allocation2], 4
      %s616 = int_to_ptr.vmem [resolvable:$true] %s615
      %621 = dma.vmem_to_hbm [thread:$0]  %s616, 1024, %s5, [#allocation3], 512, 512, 32
    $region25: #{mlp_forward.1} parent=1 // pred_fallthru
      _
    // Predicated region
    $region26: #{mlp_forward.1} parent=1 // pred_check
      _
    $region27: #{mlp_forward.1} parent=1 // pred_check_branch
      %623 = sbr.rel (0) target = $region29
    $region28: #{mlp_forward.1} parent=1 // pred_region
      %624 = dma.done [#allocation3], 1024
    $region29: #{mlp_forward.1} parent=1 // pred_fallthru
      _
    %625 = vsyncpa [#allocation3], 1

</llo_original>
